<compile_context>
chip_gen: v7x
topology: tpu7x:2x2x1
jax: 0.10.0
libtpu: 0.0.40
codegen_flags: <defaults>
</compile_context>

<pallas_src>
import functools

import jax
import jax.numpy as jnp
from jax.experimental import pallas as pl
from jax.experimental.pallas import tpu as pltpu

_LANE = 128


def _round_up(v, m):
    return ((v + m - 1) // m) * m


# ---------------------------------------------------------------------------
# Kernels (one batch tile per grid step; weights/biases resident in VMEM)
# ---------------------------------------------------------------------------
def _block_kernel_proj(x_ref, w1s_ref, b1s_ref, w2_ref, b2_ref, o_ref):
    """Projection shortcut: fc1 and shortcut weights fused along the N axis."""
    n = w2_ref.shape[0]                                       # out_p
    x = x_ref[...].astype(w1s_ref.dtype)
    # One wide MXU pass over x: [fc1 | shortcut] -> (TM, 2*out_p), f32 acc.
    hs = jnp.dot(x, w1s_ref[...], preferred_element_type=jnp.float32) + b1s_ref[...]
    h = jnp.maximum(hs[:, :n], 0.0).astype(w2_ref.dtype)      # relu(fc1(x))
    out = jnp.dot(h, w2_ref[...], preferred_element_type=jnp.float32) + b2_ref[...]
    o_ref[...] = jnp.maximum(out + hs[:, n:], 0.0).astype(o_ref.dtype)


def _block_kernel_identity(x_ref, w1_ref, b1_ref, w2_ref, b2_ref, o_ref):
    """Identity shortcut (in_features == out_features); residual added in f32."""
    x = x_ref[...]
    xc = x.astype(w1_ref.dtype)
    h = jnp.dot(xc, w1_ref[...], preferred_element_type=jnp.float32) + b1_ref[...]
    h = jnp.maximum(h, 0.0).astype(w2_ref.dtype)
    out = jnp.dot(h, w2_ref[...], preferred_element_type=jnp.float32) + b2_ref[...]
    o_ref[...] = jnp.maximum(out + x.astype(jnp.float32), 0.0).astype(o_ref.dtype)


# ---------------------------------------------------------------------------
# One-time parameter preparation (PyTorch (out,in) layout -> padded (in,out))
# ---------------------------------------------------------------------------
def prepare_params(raw, compute_dtype=jnp.bfloat16):
    """Transpose, cast and lane-pad weights once, outside the per-call path.

    For the projection path, fc1 and shortcut weights/biases are concatenated
    along the output axis so the kernel issues a single wide matmul over x.
    Returns (params, meta) with meta = (in_f, out_f, in_p, out_p, has_proj).
    """
    out_f, in_f = raw["w1"].shape
    in_p = _round_up(in_f, _LANE)
    out_p = _round_up(out_f, _LANE)
    has_proj = "ws" in raw

    def pad_w(w, rows, cols):                       # (out,in) -> zero-padded (in_p, out_p)
        wt = w.T.astype(compute_dtype)
        return jnp.pad(wt, ((0, rows - wt.shape[0]), (0, cols - wt.shape[1])))

    def pad_b(b, cols):                             # biases stay f32 (added to f32 acc)
        return jnp.pad(b.astype(jnp.float32), (0, cols - b.shape[0])).reshape(1, cols)

    params = {"w2": pad_w(raw["w2"], out_p, out_p), "b2": pad_b(raw["b2"], out_p)}
    if has_proj:
        params["w1s"] = jnp.concatenate(
            [pad_w(raw["w1"], in_p, out_p), pad_w(raw["ws"], in_p, out_p)], axis=1)
        params["b1s"] = jnp.concatenate(
            [pad_b(raw["b1"], out_p), pad_b(raw["bs"], out_p)], axis=1)
    else:
        params["w1"] = pad_w(raw["w1"], in_p, out_p)
        params["b1"] = pad_b(raw["b1"], out_p)
    meta = (in_f, out_f, in_p, out_p, has_proj)
    return params, meta


# ---------------------------------------------------------------------------
# VMEM sizing helpers
# ---------------------------------------------------------------------------
@functools.lru_cache(maxsize=None)
def _vmem_capacity_bytes():
    try:
        return int(pltpu.get_tpu_info().vmem_capacity_bytes)
    except Exception:
        return 64 * 1024 * 1024       # unknown chip: assume the smallest (v7x)


def _vmem_budget(tm, in_p, out_p, w1_cols, x_item, w_item):
    """Worst-case VMEM bytes for one grid step (single-buffered weights)."""
    w_bytes = (in_p * w1_cols + out_p * out_p) * w_item
    b_bytes = (w1_cols + out_p) * 4
    act = 2 * tm * in_p * x_item + 2 * tm * out_p * w_item            # dbl-buffered x / out tiles
    tmp = tm * w1_cols * 4 + tm * out_p * 4 + tm * out_p * w_item     # live f32 temporaries + h
    return w_bytes + b_bytes + act + tmp + (1 << 20)                  # + Mosaic scratch slack


# ---------------------------------------------------------------------------
# Forward
# ---------------------------------------------------------------------------
@functools.partial(jax.jit, static_argnums=(2,))
def basic_block2(x, params, meta):
    in_f, out_f, in_p, out_p, has_proj = meta
    B = x.shape[0]
    w1_key, b1_key = ("w1s", "b1s") if has_proj else ("w1", "b1")
    compute_dtype = params[w1_key].dtype
    w_item = jnp.dtype(compute_dtype).itemsize
    x_item = jnp.dtype(x.dtype).itemsize
    w1_cols = params[w1_key].shape[1]                 # out_p (identity) or 2*out_p (proj)

    cap = _vmem_capacity_bytes()
    cap_limit = int(cap * 0.80)                       # keep headroom for internal scratch / DMA
    fits = lambda tm: _vmem_budget(tm, in_p, out_p, w1_cols, x_item, w_item) <= cap_limit

    # Batch tile: multiple of the dtype's sublane pack (unmasked, vreg-dense
    # stores); 512 only on 128-MiB-VMEM parts. Larger tiles amortize the
    # ~0.35us per-grid-step overhead.
    pack = 8 * max(1, 4 // w_item)                    # 8 f32 / 16 bf16 / 32 int8-fp8
    candidates = []
    if B >= 512 and cap >= 96 * 1024 * 1024:
        candidates.append(512)
    if B >= 256:
        candidates.append(256)
    if B >= 128:
        candidates.append(128)
    candidates.append(min(_round_up(max(B, 1), pack), 128))
    TM = next((tm for tm in candidates if fits(tm)), None)
    if TM is None:
        # TODO(synk): K/N-tiled accumulator path for hidden sizes whose resident
        # weights overflow VMEM (hits first on v7x's 64 MiB).
        raise NotImplementedError(
            "Resident weights need ~%.1f MiB but only %.1f MiB of VMEM is available; "
            "a K/N-tiled fallback is not implemented yet."
            % (_vmem_budget(candidates[-1], in_p, out_p, w1_cols, x_item, w_item) / 2**20,
               cap_limit / 2**20))

    # Only tiny batches (B < one tile) get row padding; trailing partial blocks
    # of the cdiv grid are handled by masked stores (garbage rows are sliced
    # off). Feature/K padding of x must be true zeros: zero weight rows times
    # garbage (possibly NaN) columns would otherwise inject NaN.
    rows = TM if B < TM else B
    if rows != B or in_p != in_f:
        x = jnp.pad(x, ((0, rows - B), (0, in_p - in_f)))

    grid = (pl.cdiv(rows, TM),)
    x_spec = pl.BlockSpec((TM, in_p), lambda i: (i, 0))
    o_spec = pl.BlockSpec((TM, out_p), lambda i: (i, 0))
    # Resident weights/biases: constant index_map + single buffer (never re-DMA'd).
    w_spec = lambda r, c: pl.BlockSpec((r, c), lambda i: (0, 0), pipeline_mode=pl.Buffered(1))
    b_spec = lambda c: pl.BlockSpec((1, c), lambda i: (0, 0), pipeline_mode=pl.Buffered(1))

    budget = _vmem_budget(TM, in_p, out_p, w1_cols, x_item, w_item)
    vmem_limit = int(min(max(int(budget * 1.25), 32 * 1024 * 1024), cap_limit))

    flops = 2 * rows * in_p * w1_cols + 2 * rows * out_p * out_p
    bytes_accessed = (rows * in_p * x_item + rows * out_p * w_item
                      + (in_p * w1_cols + out_p * out_p) * w_item + (w1_cols + out_p) * 4)
    cost = pl.CostEstimate(flops=flops, transcendentals=0, bytes_accessed=bytes_accessed)

    cp = pltpu.CompilerParams(
        dimension_semantics=("parallel",),            # megacore-shard the batch axis on v7x
        vmem_limit_bytes=vmem_limit,
    )
    out_shape = jax.ShapeDtypeStruct((rows, out_p), compute_dtype)

    if has_proj:
        y = pl.pallas_call(
            _block_kernel_proj,
            out_shape=out_shape,
            grid=grid,
            in_specs=[x_spec, w_spec(in_p, w1_cols), b_spec(w1_cols),
                      w_spec(out_p, out_p), b_spec(out_p)],
            out_specs=o_spec,
            compiler_params=cp,
            cost_estimate=cost,
        )(x, params["w1s"], params["b1s"], params["w2"], params["b2"])
    else:
        y = pl.pallas_call(
            _block_kernel_identity,
            out_shape=out_shape,
            grid=grid,
            in_specs=[x_spec, w_spec(in_p, out_p), b_spec(out_p),
                      w_spec(out_p, out_p), b_spec(out_p)],
            out_specs=o_spec,
            compiler_params=cp,
            cost_estimate=cost,
        )(x, params["w1"], params["b1"], params["w2"], params["b2"])

    if rows != B or out_p != out_f:
        y = y[:B, :out_f]
    return y


# ---------------------------------------------------------------------------
# Init / reference / tests
# ---------------------------------------------------------------------------
def init_params(key, in_features, out_features):
    """Deterministic init mimicking nn.Linear's uniform(+/- 1/sqrt(fan_in)); PyTorch layout."""
    ks = jax.random.split(key, 6)

    def lin(kw, kb, fan_in, fan_out):
        bound = 1.0 / jnp.sqrt(fan_in)
        w = jax.random.uniform(kw, (fan_out, fan_in), jnp.float32, -bound, bound)
        b = jax.random.uniform(kb, (fan_out,), jnp.float32, -bound, bound)
        return w, b

    w1, b1 = lin(ks[0], ks[1], in_features, out_features)
    w2, b2 = lin(ks[2], ks[3], out_features, out_features)
    raw = {"w1": w1, "b1": b1, "w2": w2, "b2": b2}
    if in_features != out_features:
        ws, bs = lin(ks[4], ks[5], in_features, out_features)
        raw.update({"ws": ws, "bs": bs})
    return raw


def _reference(x, p):
    h = jax.nn.relu(x @ p["w1"].T + p["b1"])
    out = h @ p["w2"].T + p["b2"]
    sc = (x @ p["ws"].T + p["bs"]) if "ws" in p else x
    return jax.nn.relu(out + sc)


if __name__ == "__main__":
    key = jax.random.PRNGKey(0)
    k_x, k_p, k_p2, k_x3 = jax.random.split(key, 4)

    # Case 1: projection shortcut (in != out), f32 compute -> bit-faithful check.
    B, in_f, out_f = 8, 32, 64
    x = jax.random.normal(k_x, (B, in_f), jnp.float32)
    raw = init_params(k_p, in_f, out_f)
    params_f32, meta = prepare_params(raw, compute_dtype=jnp.float32)
    y = basic_block2(x, params_f32, meta)
    jax.block_until_ready(y)
    y_ref = _reference(x, raw)
    assert y.shape == (B, out_f)
    assert jnp.allclose(y, y_ref, atol=2e-5, rtol=2e-5)

    # Case 2: identity shortcut (in == out), f32.
    x2 = jax.random.normal(k_x, (B, out_f), jnp.float32)
    raw2 = init_params(k_p2, out_f, out_f)
    params2, meta2 = prepare_params(raw2, compute_dtype=jnp.float32)
    y2 = basic_block2(x2, params2, meta2)
    jax.block_until_ready(y2)
    assert jnp.allclose(y2, _reference(x2, raw2), atol=2e-5, rtol=2e-5)

    # Case 3: cdiv grid with a partial trailing block (B=300 -> TM=256, grid=2).
    B3 = 300
    x3 = jax.random.normal(k_x3, (B3, in_f), jnp.float32)
    y3 = basic_block2(x3, params_f32, meta)
    jax.block_until_ready(y3)
    assert y3.shape == (B3, out_f)
    assert jnp.allclose(y3, _reference(x3, raw), atol=2e-5, rtol=2e-5)

    # Case 4: default bf16 compute (bf16 MXU, f32 accumulation) -- loose tolerance.
    params_bf, meta_bf = prepare_params(raw)            # default compute_dtype=bfloat16
    y_bf = basic_block2(x, params_bf, meta_bf)
    jax.block_until_ready(y_bf)
    assert y_bf.shape == (B, out_f) and y_bf.dtype == jnp.bfloat16
    assert jnp.allclose(y_bf.astype(jnp.float32), y_ref, atol=0.15, rtol=0.15)

    # Case 5: bf16 compute with a partial trailing batch block.
    y3_bf = basic_block2(x3, params_bf, meta_bf)
    jax.block_until_ready(y3_bf)
    assert jnp.allclose(y3_bf.astype(jnp.float32), _reference(x3, raw), atol=0.15, rtol=0.15)

    print("KERNEL_OK")
</pallas_src>

<mosaic_0001>
module attributes {stable_mosaic.version = 11 : i64} {
  func.func @_block_kernel_proj(%arg0: i32, %arg1: memref<8x128xf32, #tpu.memory_space<vmem>>, %arg2: memref<128x256xf32, #tpu.memory_space<vmem>>, %arg3: memref<1x256xf32, #tpu.memory_space<vmem>>, %arg4: memref<128x128xf32, #tpu.memory_space<vmem>>, %arg5: memref<1x128xf32, #tpu.memory_space<vmem>>, %arg6: memref<8x128xf32, #tpu.memory_space<vmem>>) attributes {dimension_semantics = [#tpu.dimension_semantics<parallel>], iteration_bounds = array<i64: 1>, scalar_prefetch = 0 : i64, scratch_operands = 0 : i64, tpu.core_type = #tpu.core_type<tc>, window_params = [{transform_indices = @transform_0, window_bounds = array<i64: 8, 128>}, {pipeline_mode = #tpu.pipeline_mode<synchronous>, transform_indices = @transform_1, window_bounds = array<i64: 128, 256>}, {pipeline_mode = #tpu.pipeline_mode<synchronous>, transform_indices = @transform_2, window_bounds = array<i64: 1, 256>}, {pipeline_mode = #tpu.pipeline_mode<synchronous>, transform_indices = @transform_3, window_bounds = array<i64: 128, 128>}, {pipeline_mode = #tpu.pipeline_mode<synchronous>, transform_indices = @transform_4, window_bounds = array<i64: 1, 128>}, {transform_indices = @transform_5, window_bounds = array<i64: 8, 128>}]} {
    %c0 = arith.constant 0 : index
    %c0_0 = arith.constant 0 : index
    %0 = vector.load %arg1[%c0, %c0_0] : memref<8x128xf32, #tpu.memory_space<vmem>>, vector<8x128xf32>
    %c0_1 = arith.constant 0 : index
    %c0_2 = arith.constant 0 : index
    %1 = vector.load %arg2[%c0_1, %c0_2] : memref<128x256xf32, #tpu.memory_space<vmem>>, vector<128x256xf32>
    %cst = arith.constant dense<0.000000e+00> : vector<8x256xf32>
    %2 = tpu.matmul %0, %1, %cst {dimension_numbers = #tpu.dot_dimension_numbers<[1], [0], [0], [1], [0, 0, 1, 1], [], []>} : vector<8x128xf32>, vector<128x256xf32>, vector<8x256xf32> -> vector<8x256xf32>
    %c0_3 = arith.constant 0 : index
    %c0_4 = arith.constant 0 : index
    %3 = vector.load %arg3[%c0_3, %c0_4] : memref<1x256xf32, #tpu.memory_space<vmem>>, vector<1x256xf32>
    %4 = vector.broadcast %3 : vector<1x256xf32> to vector<8x256xf32>
    %5 = arith.addf %2, %4 : vector<8x256xf32>
    %6 = vector.extract_strided_slice %5 {offsets = [0, 0], sizes = [8, 128], strides = [1, 1]} : vector<8x256xf32> to vector<8x128xf32>
    %cst_5 = arith.constant 0.000000e+00 : f32
    %7 = vector.broadcast %cst_5 : f32 to vector<8x128xf32>
    %8 = arith.maximumf %6, %7 : vector<8x128xf32>
    %c0_6 = arith.constant 0 : index
    %c0_7 = arith.constant 0 : index
    %9 = vector.load %arg4[%c0_6, %c0_7] : memref<128x128xf32, #tpu.memory_space<vmem>>, vector<128x128xf32>
    %cst_8 = arith.constant dense<0.000000e+00> : vector<8x128xf32>
    %10 = tpu.matmul %8, %9, %cst_8 {dimension_numbers = #tpu.dot_dimension_numbers<[1], [0], [0], [1], [0, 0, 1, 1], [], []>} : vector<8x128xf32>, vector<128x128xf32>, vector<8x128xf32> -> vector<8x128xf32>
    %c0_9 = arith.constant 0 : index
    %c0_10 = arith.constant 0 : index
    %11 = vector.load %arg5[%c0_9, %c0_10] : memref<1x128xf32, #tpu.memory_space<vmem>>, vector<1x128xf32>
    %12 = vector.broadcast %11 : vector<1x128xf32> to vector<8x128xf32>
    %13 = arith.addf %10, %12 : vector<8x128xf32>
    %14 = vector.extract_strided_slice %5 {offsets = [0, 128], sizes = [8, 128], strides = [1, 1]} : vector<8x256xf32> to vector<8x128xf32>
    %15 = arith.addf %13, %14 : vector<8x128xf32>
    %cst_11 = arith.constant 0.000000e+00 : f32
    %16 = vector.broadcast %cst_11 : f32 to vector<8x128xf32>
    %17 = arith.maximumf %15, %16 : vector<8x128xf32>
    %c0_12 = arith.constant 0 : index
    %c0_13 = arith.constant 0 : index
    %18 = vector.load %arg6[%c0_12, %c0_13] : memref<8x128xf32, #tpu.memory_space<vmem>>, vector<8x128xf32>
    tpu.vector_store %arg6[%c0_12, %c0_13], %17 {strides = array<i32>} : memref<8x128xf32, #tpu.memory_space<vmem>>, vector<8x128xf32>,
    return
  }
  func.func @transform_0(%arg0: i32) -> (i32, i32) {
    %c0_i32 = arith.constant 0 : i32
    %c0_i32_0 = arith.constant 0 : i32
    return %arg0, %c0_i32 : i32, i32
  }
  func.func @transform_1(%arg0: i32) -> (i32, i32) {
    %c0_i32 = arith.constant 0 : i32
    %c0_i32_0 = arith.constant 0 : i32
    %c0_i32_1 = arith.constant 0 : i32
    return %c0_i32, %c0_i32_0 : i32, i32
  }
  func.func @transform_2(%arg0: i32) -> (i32, i32) {
    %c0_i32 = arith.constant 0 : i32
    %c0_i32_0 = arith.constant 0 : i32
    %c0_i32_1 = arith.constant 0 : i32
    return %c0_i32, %c0_i32_0 : i32, i32
  }
  func.func @transform_3(%arg0: i32) -> (i32, i32) {
    %c0_i32 = arith.constant 0 : i32
    %c0_i32_0 = arith.constant 0 : i32
    %c0_i32_1 = arith.constant 0 : i32
    return %c0_i32, %c0_i32_0 : i32, i32
  }
  func.func @transform_4(%arg0: i32) -> (i32, i32) {
    %c0_i32 = arith.constant 0 : i32
    %c0_i32_0 = arith.constant 0 : i32
    %c0_i32_1 = arith.constant 0 : i32
    return %c0_i32, %c0_i32_0 : i32, i32
  }
  func.func @transform_5(%arg0: i32) -> (i32, i32) {
    %c0_i32 = arith.constant 0 : i32
    %c0_i32_0 = arith.constant 0 : i32
    return %arg0, %c0_i32 : i32, i32
  }
}

</mosaic_0001>

<llo_original>
// kernel: basic_block2.1
$region0: #{basic_block2.1}
  #allocation0 [shape = 'u32[]', space=smem, size = 0x4, offset = 0x4, fixed_abs, tag = 'smem constant byte address 0x4 - core index']
  #allocation1 [shape = 'u32[144,128]{1,0:T(1,128)}', space=vmem, size = 0x12000, scoped, tag = 'internal scratch']
  %s0 = inlined_call_operand.vmem [shape: f32[8,128], index: 0, kind: input, shape index: {}]
  %s1 = inlined_call_operand.hbm [shape: f32[128,256], index: 1, kind: input, shape index: {}]
  %s2 = inlined_call_operand.vmem [shape: f32[1,256], index: 2, kind: input, shape index: {}]
  %s3 = inlined_call_operand.hbm [shape: f32[128,128], index: 3, kind: input, shape index: {}]
  %s4 = inlined_call_operand.vmem [shape: f32[1,128], index: 4, kind: input, shape index: {}]
  %s5 = inlined_call_operand.hbm [shape: f32[8,128], index: 5, kind: output, shape index: {}]
  %s6 = sld [smem:[#allocation0]]
  $region38: #{basic_block2.1} parent=0
    _
  %s8 = ssub.s32 1, %s6
  %s9 = scalar_select 0, %s8, %s6
  $region1: #{basic_block2.1} parent=0
    #allocation2 [shape = 'u8[131072]{0}', space=vmem, size = 0x20000, scoped, tag = 'input window, operand 1, single buffered']
    #allocation3 [shape = 's32[1]{0}', space=sflag, size = 0x4, scoped, tag = 'scoped memory for basic_block2.1']
    #allocation4 [shape = 's32[1]{0}', space=sflag, size = 0x4, scoped, tag = 'scoped memory for basic_block2.1']
    #allocation5 [shape = 'u8[65536]{0}', space=vmem, size = 0x10000, scoped, tag = 'input window, operand 3, single buffered']
    #allocation6 [shape = 's32[1]{0}', space=sflag, size = 0x4, scoped, tag = 'scoped memory for basic_block2.1']
    #allocation7 [shape = 'u8[4096]{0}', space=vmem, size = 0x1000, scoped, tag = 'output window, operand 0, single buffered']
    %10 = vsyncpa [#allocation3], 0
    %11 = vsyncpa [#allocation6], 0
    %12 = vsyncpa [#allocation4], 0
    // Predicated region
    $region2: #{basic_block2.1} parent=1 // pred_check
      _
    $region3: #{basic_block2.1} parent=1 // pred_check_branch
      %14 = sbr.rel (0) target = $region5
    $region4: #{basic_block2.1} parent=1 // pred_region
      _
    $region5: #{basic_block2.1} parent=1 // pred_fallthru
      _
    // Predicated region
    $region6: #{basic_block2.1} parent=1 // pred_check
      _
    $region7: #{basic_block2.1} parent=1 // pred_check_branch
      %16 = sbr.rel (0) target = $region9
    $region8: #{basic_block2.1} parent=1 // pred_region
      %s18 = ssub.s32 4096, 4096
      %19 = vsyncadd [#allocation3], %s18
      %s20 = sshll.u32 [#allocation2], 4
      %s21 = int_to_ptr.vmem [resolvable:$true] %s20
      %26 = dma.hbm_to_vmem [thread:$0]  %s1, 4096, %s21, [#allocation3], 256, 256, 16
    $region9: #{basic_block2.1} parent=1 // pred_fallthru
      _
    // Predicated region
    $region10: #{basic_block2.1} parent=1 // pred_check
      _
    $region11: #{basic_block2.1} parent=1 // pred_check_branch
      %28 = sbr.rel (0) target = $region13
    $region12: #{basic_block2.1} parent=1 // pred_region
      _
    $region13: #{basic_block2.1} parent=1 // pred_fallthru
      _
    // Predicated region
    $region14: #{basic_block2.1} parent=1 // pred_check
      _
    $region15: #{basic_block2.1} parent=1 // pred_check_branch
      %30 = sbr.rel (0) target = $region17
    $region16: #{basic_block2.1} parent=1 // pred_region
      %s32 = ssub.s32 2048, 2048
      %33 = vsyncadd [#allocation6], %s32
      %s34 = sshll.u32 [#allocation5], 4
      %s35 = int_to_ptr.vmem [resolvable:$true] %s34
      %40 = dma.hbm_to_vmem [thread:$0]  %s3, 2048, %s35, [#allocation6], 128, 128, 8
    $region17: #{basic_block2.1} parent=1 // pred_fallthru
      _
    // Predicated region
    $region18: #{basic_block2.1} parent=1 // pred_check
      _
    $region19: #{basic_block2.1} parent=1 // pred_check_branch
      %42 = sbr.rel (0) target = $region21
    $region20: #{basic_block2.1} parent=1 // pred_region
      _
    $region21: #{basic_block2.1} parent=1 // pred_fallthru
      _
    // Predicated region
    $region22: #{basic_block2.1} parent=1 // pred_check
      _
    $region23: #{basic_block2.1} parent=1 // pred_check_branch
      %44 = sbr.rel (0) target = $region25
    $region24: #{basic_block2.1} parent=1 // pred_region
      %45 = dma.done [#allocation3], 4096
    $region25: #{basic_block2.1} parent=1 // pred_fallthru
      _
    // Predicated region
    $region26: #{basic_block2.1} parent=1 // pred_check
      _
    $region27: #{basic_block2.1} parent=1 // pred_check_branch
      %47 = sbr.rel (0) target = $region29
    $region28: #{basic_block2.1} parent=1 // pred_region
      %48 = dma.done [#allocation6], 2048
    $region29: #{basic_block2.1} parent=1 // pred_fallthru
      _
    %v49 = vld [vmem:[%s0] sm:$0xff]
    %v50 = vld [vmem:[#allocation2] sm:$0xff]
    %v51 = vld [vmem:[#allocation2 + $0x8] sm:$0xff]
    %v52 = vld [vmem:[#allocation2 + $0x10] sm:$0xff]
    %v53 = vld [vmem:[#allocation2 + $0x18] sm:$0xff]
    %v54 = vld [vmem:[#allocation2 + $0x20] sm:$0xff]
    %v55 = vld [vmem:[#allocation2 + $0x28] sm:$0xff]
    %v56 = vld [vmem:[#allocation2 + $0x30] sm:$0xff]
    %v57 = vld [vmem:[#allocation2 + $0x38] sm:$0xff]
    %v58 = vld [vmem:[#allocation2 + $0x40] sm:$0xff]
    %v59 = vld [vmem:[#allocation2 + $0x48] sm:$0xff]
    %v60 = vld [vmem:[#allocation2 + $0x50] sm:$0xff]
    %v61 = vld [vmem:[#allocation2 + $0x58] sm:$0xff]
    %v62 = vld [vmem:[#allocation2 + $0x60] sm:$0xff]
    %v63 = vld [vmem:[#allocation2 + $0x68] sm:$0xff]
    %v64 = vld [vmem:[#allocation2 + $0x70] sm:$0xff]
    %v65 = vld [vmem:[#allocation2 + $0x78] sm:$0xff]
    %v66 = vld [vmem:[#allocation2 + $0x80] sm:$0xff]
    %v67 = vld [vmem:[#allocation2 + $0x88] sm:$0xff]
    %v68 = vld [vmem:[#allocation2 + $0x90] sm:$0xff]
    %v69 = vld [vmem:[#allocation2 + $0x98] sm:$0xff]
    %v70 = vld [vmem:[#allocation2 + $0xa0] sm:$0xff]
    %v71 = vld [vmem:[#allocation2 + $0xa8] sm:$0xff]
    %v72 = vld [vmem:[#allocation2 + $0xb0] sm:$0xff]
    %v73 = vld [vmem:[#allocation2 + $0xb8] sm:$0xff]
    %v74 = vld [vmem:[#allocation2 + $0xc0] sm:$0xff]
    %v75 = vld [vmem:[#allocation2 + $0xc8] sm:$0xff]
    %v76 = vld [vmem:[#allocation2 + $0xd0] sm:$0xff]
    %v77 = vld [vmem:[#allocation2 + $0xd8] sm:$0xff]
    %v78 = vld [vmem:[#allocation2 + $0xe0] sm:$0xff]
    %v79 = vld [vmem:[#allocation2 + $0xe8] sm:$0xff]
    %v80 = vld [vmem:[#allocation2 + $0xf0] sm:$0xff]
    %v81 = vld [vmem:[#allocation2 + $0xf8] sm:$0xff]
    %v82 = vld [vmem:[%s2] sm:$0x3]
    %v84 = vlaneseq
    %v85 = vshrl.u32 %v84, 7
    %v86 = vsub.s32 0, %v85
    %v87 = vrot.slane %v82, %v86
    %v88 = vlaneseq
    %v89 = vshrl.u32 %v88, 7
    %v90 = vsub.s32 1, %v89
    %v91 = vrot.slane %v82, %v90
    %94 = vmatprep.subr.mxu0 %v51
    %95 = vmatpush1.msra.mxu0 %v50
    %96 = vmatprep.subr.mxu0 %v53
    %97 = vmatpush1.msra.mxu0 %v52
    %98 = vmatprep.subr.mxu0 %v55
    %99 = vmatpush1.msra.mxu0 %v54
    %100 = vmatprep.subr.mxu0 %v57
    %101 = vmatpush1.msra.mxu0 %v56
    %102 = vmatprep.subr.mxu0 %v59
    %103 = vmatpush1.msra.mxu0 %v58
    %104 = vmatprep.subr.mxu0 %v61
    %105 = vmatpush1.msra.mxu0 %v60
    %106 = vmatprep.subr.mxu0 %v63
    %107 = vmatpush1.msra.mxu0 %v62
    %108 = vmatprep.subr.mxu0 %v65
    %109 = vmatpush1.msra.mxu0 %v64
    %110 = vmatprep.subr.mxu0 %v67
    %111 = vmatpush1.msra.mxu0 %v66
    %112 = vmatprep.subr.mxu0 %v69
    %113 = vmatpush1.msra.mxu0 %v68
    %114 = vmatprep.subr.mxu0 %v71
    %115 = vmatpush1.msra.mxu0 %v70
    %116 = vmatprep.subr.mxu0 %v73
    %117 = vmatpush1.msra.mxu0 %v72
    %118 = vmatprep.subr.mxu0 %v75
    %119 = vmatpush1.msra.mxu0 %v74
    %120 = vmatprep.subr.mxu0 %v77
    %121 = vmatpush1.msra.mxu0 %v76
    %122 = vmatprep.subr.mxu0 %v79
    %123 = vmatpush1.msra.mxu0 %v78
    %124 = vmatprep.subr.mxu0 %v81
    %125 = vmatpush1.msra.mxu0 %v80
    %126 = vmatprep.subr.mxu0 0.0
    %127 = vmatpush1.msra.mxu0 0.0
    %128 = vmatprep.subr.mxu0 0.0
    %129 = vmatpush1.msra.mxu0 0.0
    %130 = vmatprep.subr.mxu0 0.0
    %131 = vmatpush1.msra.mxu0 0.0
    %132 = vmatprep.subr.mxu0 0.0
    %133 = vmatpush1.msra.mxu0 0.0
    %134 = vmatprep.subr.mxu0 0.0
    %135 = vmatpush1.msra.mxu0 0.0
    %136 = vmatprep.subr.mxu0 0.0
    %137 = vmatpush1.msra.mxu0 0.0
    %138 = vmatprep.subr.mxu0 0.0
    %139 = vmatpush1.msra.mxu0 0.0
    %140 = vmatprep.subr.mxu0 0.0
    %141 = vmatpush1.msra.mxu0 0.0
    %142 = vmatprep.subr.mxu0 0.0
    %143 = vmatpush1.msra.mxu0 0.0
    %144 = vmatprep.subr.mxu0 0.0
    %145 = vmatpush1.msra.mxu0 0.0
    %146 = vmatprep.subr.mxu0 0.0
    %147 = vmatpush1.msra.mxu0 0.0
    %148 = vmatprep.subr.mxu0 0.0
    %149 = vmatpush1.msra.mxu0 0.0
    %150 = vmatprep.subr.mxu0 0.0
    %151 = vmatpush1.msra.mxu0 0.0
    %152 = vmatprep.subr.mxu0 0.0
    %153 = vmatpush1.msra.mxu0 0.0
    %154 = vmatprep.subr.mxu0 0.0
    %155 = vmatpush1.msra.mxu0 0.0
    %156 = vmatprep.subr.mxu0 0.0
    %157 = vmatpush1.msra.mxu0 0.0
    %158 = vmatprep.mubr.f32.mxu0 0.0
    %159 = vmatmul.mubr.f32.gmra.mrb[0].mxu0 %v49
    %v160 = vpop.f32.mrb[0].mxu0
    %v161 = vadd.f32 %v87, %v160
    %v162 = vpop.f32.mrb[0].mxu0
    %v163 = vadd.f32 %v91, %v162
    %164 = vdwg.mxu0
    %v165 = vmax.f32 %v161, 0.0
    %v166 = vld [vmem:[#allocation5] sm:$0xff]
    %v167 = vld [vmem:[#allocation5 + $0x8] sm:$0xff]
    %v168 = vld [vmem:[#allocation5 + $0x10] sm:$0xff]
    %v169 = vld [vmem:[#allocation5 + $0x18] sm:$0xff]
    %v170 = vld [vmem:[#allocation5 + $0x20] sm:$0xff]
    %v171 = vld [vmem:[#allocation5 + $0x28] sm:$0xff]
    %v172 = vld [vmem:[#allocation5 + $0x30] sm:$0xff]
    %v173 = vld [vmem:[#allocation5 + $0x38] sm:$0xff]
    %v174 = vld [vmem:[#allocation5 + $0x40] sm:$0xff]
    %v175 = vld [vmem:[#allocation5 + $0x48] sm:$0xff]
    %v176 = vld [vmem:[#allocation5 + $0x50] sm:$0xff]
    %v177 = vld [vmem:[#allocation5 + $0x58] sm:$0xff]
    %v178 = vld [vmem:[#allocation5 + $0x60] sm:$0xff]
    %v179 = vld [vmem:[#allocation5 + $0x68] sm:$0xff]
    %v180 = vld [vmem:[#allocation5 + $0x70] sm:$0xff]
    %v181 = vld [vmem:[#allocation5 + $0x78] sm:$0xff]
    %v182 = vld [vmem:[%s4] sm:$0x1]
    %v184 = vlaneseq
    %v185 = vshrl.u32 %v184, 7
    %v186 = vsub.s32 0, %v185
    %v187 = vrot.slane %v182, %v186
    %189 = vmatprep.subr.mxu0 0.0
    %190 = vmatpush1.msra.mxu0 %v166
    %191 = vmatprep.subr.mxu0 0.0
    %192 = vmatpush1.msra.mxu0 %v167
    %193 = vmatprep.subr.mxu0 0.0
    %194 = vmatpush1.msra.mxu0 %v168
    %195 = vmatprep.subr.mxu0 0.0
    %196 = vmatpush1.msra.mxu0 %v169
    %197 = vmatprep.subr.mxu0 0.0
    %198 = vmatpush1.msra.mxu0 %v170
    %199 = vmatprep.subr.mxu0 0.0
    %200 = vmatpush1.msra.mxu0 %v171
    %201 = vmatprep.subr.mxu0 0.0
    %202 = vmatpush1.msra.mxu0 %v172
    %203 = vmatprep.subr.mxu0 0.0
    %204 = vmatpush1.msra.mxu0 %v173
    %205 = vmatprep.subr.mxu0 0.0
    %206 = vmatpush1.msra.mxu0 %v174
    %207 = vmatprep.subr.mxu0 0.0
    %208 = vmatpush1.msra.mxu0 %v175
    %209 = vmatprep.subr.mxu0 0.0
    %210 = vmatpush1.msra.mxu0 %v176
    %211 = vmatprep.subr.mxu0 0.0
    %212 = vmatpush1.msra.mxu0 %v177
    %213 = vmatprep.subr.mxu0 0.0
    %214 = vmatpush1.msra.mxu0 %v178
    %215 = vmatprep.subr.mxu0 0.0
    %216 = vmatpush1.msra.mxu0 %v179
    %217 = vmatprep.subr.mxu0 0.0
    %218 = vmatpush1.msra.mxu0 %v180
    %219 = vmatprep.subr.mxu0 0.0
    %220 = vmatpush1.msra.mxu0 %v181
    %221 = vmatprep.subr.mxu0 0.0
    %222 = vmatpush1.msra.mxu0 0.0
    %223 = vmatprep.subr.mxu0 0.0
    %224 = vmatpush1.msra.mxu0 0.0
    %225 = vmatprep.subr.mxu0 0.0
    %226 = vmatpush1.msra.mxu0 0.0
    %227 = vmatprep.subr.mxu0 0.0
    %228 = vmatpush1.msra.mxu0 0.0
    %229 = vmatprep.subr.mxu0 0.0
    %230 = vmatpush1.msra.mxu0 0.0
    %231 = vmatprep.subr.mxu0 0.0
    %232 = vmatpush1.msra.mxu0 0.0
    %233 = vmatprep.subr.mxu0 0.0
    %234 = vmatpush1.msra.mxu0 0.0
    %235 = vmatprep.subr.mxu0 0.0
    %236 = vmatpush1.msra.mxu0 0.0
    %237 = vmatprep.subr.mxu0 0.0
    %238 = vmatpush1.msra.mxu0 0.0
    %239 = vmatprep.subr.mxu0 0.0
    %240 = vmatpush1.msra.mxu0 0.0
    %241 = vmatprep.subr.mxu0 0.0
    %242 = vmatpush1.msra.mxu0 0.0
    %243 = vmatprep.subr.mxu0 0.0
    %244 = vmatpush1.msra.mxu0 0.0
    %245 = vmatprep.subr.mxu0 0.0
    %246 = vmatpush1.msra.mxu0 0.0
    %247 = vmatprep.subr.mxu0 0.0
    %248 = vmatpush1.msra.mxu0 0.0
    %249 = vmatprep.subr.mxu0 0.0
    %250 = vmatpush1.msra.mxu0 0.0
    %251 = vmatprep.subr.mxu0 0.0
    %252 = vmatpush1.msra.mxu0 0.0
    %253 = vmatprep.mubr.f32.mxu0 0.0
    %254 = vmatmul.mubr.f32.gmra.mrb[0].mxu0 %v165
    %v255 = vpop.f32.mrb[0].mxu0
    %v256 = vadd.f32 %v187, %v255
    %v257 = vpop.f32.mrb[0].mxu0
    %258 = vdwg.mxu0
    %v259 = vadd.f32 %v256, %v163
    %v260 = vmax.f32 %v259, 0.0
    %261 = vst [vmem:[#allocation7] sm:$0xff] %v260
    // Predicated region
    $region30: #{basic_block2.1} parent=1 // pred_check
      _
    $region31: #{basic_block2.1} parent=1 // pred_check_branch
      %263 = sbr.rel (0) target = $region33
    $region32: #{basic_block2.1} parent=1 // pred_region
      %s265 = ssub.s32 128, 128
      %266 = vsyncadd [#allocation4], %s265
      %s268 = sshll.u32 [#allocation7], 4
      %s269 = int_to_ptr.vmem [resolvable:$true] %s268
      %271 = dma.vmem_to_hbm [thread:$0]  %s269, 128, %s5, [#allocation4]
    $region33: #{basic_block2.1} parent=1 // pred_fallthru
      _
    // Predicated region
    $region34: #{basic_block2.1} parent=1 // pred_check
      _
    $region35: #{basic_block2.1} parent=1 // pred_check_branch
      %273 = sbr.rel (0) target = $region37
    $region36: #{basic_block2.1} parent=1 // pred_region
      %274 = dma.done [#allocation4], 128
    $region37: #{basic_block2.1} parent=1 // pred_fallthru
      _
    %275 = vsyncpa [#allocation3], 1
    %276 = vsyncpa [#allocation6], 1
    %277 = vsyncpa [#allocation4], 1

</llo_original>
